<compile_context>
chip_gen: v7x
topology: tpu7x:2x2x1
jax: 0.10.0
libtpu: 0.0.40
codegen_flags: <defaults>
</compile_context>

<pallas_src>
import jax
import jax.numpy as jnp
from jax import lax
from jax.experimental import pallas as pl
from jax.experimental.pallas import tpu as pltpu

# Module uses FEATURE_SIZE = 4096; reduced here for a small synthetic demo.
FEATURE_SIZE = 256
HIDDEN_SIZE = 32
SEQ_LEN = 8


def _round_up(a, b):
    return ((a + b - 1) // b) * b


# ---------------------------------------------------------------------------
# Host-side weight fusion helpers (run once per call, outside the kernels).
# Fused column layout: gate-major, direction-minor: [i_f,i_b,f_f,f_b,g_f,g_b,o_f,o_b]
# ---------------------------------------------------------------------------
def _fuse_cols(w_f, w_b, hidden):
    """Fuse the fwd/bwd (.., 4H) matrices (or (1,4H) biases) into (.., 8H)."""
    cols = []
    for gate in range(4):
        cols.append(w_f[:, gate * hidden:(gate + 1) * hidden])
        cols.append(w_b[:, gate * hidden:(gate + 1) * hidden])
    return jnp.concatenate(cols, axis=1)


def _fuse_hh(w_f_hh, w_b_hh, hidden):
    """Block-diagonal fused recurrent weight: (2H, 8H) acting on h=[h_f|h_b]."""
    H = hidden
    fused = jnp.zeros((2 * H, 8 * H), jnp.float32)
    for gate in range(4):
        fused = fused.at[0:H, gate * 2 * H:gate * 2 * H + H].set(
            w_f_hh[:, gate * H:(gate + 1) * H])
        fused = fused.at[H:2 * H, gate * 2 * H + H:(gate + 1) * 2 * H].set(
            w_b_hh[:, gate * H:(gate + 1) * H])
    return fused


# ---------------------------------------------------------------------------
# Kernel 1: T-tiled, pipelined layer-0 input projection (bf16 -> f32 acc).
# ---------------------------------------------------------------------------
def proj_kernel(x_ref, w_ref, b_ref, out_ref):
    out_ref[...] = (jnp.dot(x_ref[...], w_ref[...],
                            preferred_element_type=jnp.float32) + b_ref[...])


# ---------------------------------------------------------------------------
# Kernel 2: both bidirectional LSTM layers (recurrences + fused layer-1 GEMM).
# ---------------------------------------------------------------------------
def _dir_select(src_ref, dst_ref, is_fwd, seq_len):
    """dst[r] <- fwd-direction lanes of src[r], bwd-direction lanes of src[T-1-r].

    Rows are processed in (r, T-1-r) pairs, both loaded before either write,
    so src_ref and dst_ref may alias (in-place selection for layer 1).
    Runs OUTSIDE the latency-critical recurrence; iterations are independent.
    """
    T = seq_len
    n_pairs = (T + 1) // 2

    def body(p, _):
        a = src_ref[pl.ds(p, 1), :]
        b = src_ref[pl.ds(T - 1 - p, 1), :]
        dst_ref[pl.ds(p, 1), :] = jnp.where(is_fwd, a, b)
        dst_ref[pl.ds(T - 1 - p, 1), :] = jnp.where(is_fwd, b, a)
        return 0

    lax.fori_loop(0, n_pairs, body, 0, unroll=max(1, min(n_pairs, 8)))


def _bidir_recurrence(pre_sel_ref, w_hh, y_ref, seq_len, hidden,
                      is_g, fwd_mask, bwd_mask):
    """Run fwd & bwd directions interleaved in one serial chain.

    pre_sel_ref : (T, 8H) direction-selected fused pre-activations
                  (row s already holds fwd gates of time s and bwd gates of
                   time T-1-s), so the loop body does ONE dynamic row load.
    w_hh        : (2H, 8H) fused block-diagonal recurrent weight (bf16 value).
    y_ref       : (T, 2H) destination; per step, h[:, :H] (fwd) is lane-masked
                  into row s and h[:, H:] (bwd) into row T-1-s, so y_ref ends
                  up directly in output layout (no post-loop assembly).
    """
    T, H = seq_len, hidden

    def body(s, carry):
        h, c = carry                                           # (1, 2H) f32
        gates = pre_sel_ref[pl.ds(s, 1), :] + jnp.dot(
            h.astype(jnp.bfloat16), w_hh,
            preferred_element_type=jnp.float32)                # (1, 8H)
        # Full-vreg activations (2 EUP passes) + lane-mask select.
        acts = jnp.where(is_g, jnp.tanh(gates), jax.nn.sigmoid(gates))
        i_g = acts[:, 0 * 2 * H:1 * 2 * H]
        f_g = acts[:, 1 * 2 * H:2 * 2 * H]
        g_g = acts[:, 2 * 2 * H:3 * 2 * H]
        o_g = acts[:, 3 * 2 * H:4 * 2 * H]
        c = f_g * c + i_g * g_g
        h = o_g * jnp.tanh(c)
        # fwd half of h -> row s, bwd half -> row T-1-s (lane-masked stores).
        pltpu.store(y_ref.at[pl.ds(s, 1), :], h, mask=fwd_mask)
        pltpu.store(y_ref.at[pl.ds(T - 1 - s, 1), :], h, mask=bwd_mask)
        return h, c

    h0 = jnp.zeros((1, 2 * H), jnp.float32)
    c0 = jnp.zeros((1, 2 * H), jnp.float32)
    # Fully unroll for small T (demo T=8); unroll=8 otherwise.
    lax.fori_loop(0, T, body, (h0, c0), unroll=max(1, min(T, 8)))


def bilstm_kernel(pre0_ref, w0hh_ref, w1ih_ref, b1_ref, w1hh_ref, out_ref,
                  pre_sel_ref, ys0_ref):
    T = out_ref.shape[0]                 # logical sequence length (un-padded)
    H = out_ref.shape[1] // 2
    lane8 = lax.broadcasted_iota(jnp.int32, (1, 8 * H), 1)
    lane2 = lax.broadcasted_iota(jnp.int32, (1, 2 * H), 1)
    is_g = (lane8 >= 4 * H) & (lane8 < 6 * H)       # tanh-gate lanes
    is_fwd8 = (lane8 % (2 * H)) < H                 # fwd-direction lanes (8H)
    fwd_mask = lane2 < H                            # fwd-direction lanes (2H)
    bwd_mask = lane2 >= H

    # ----- layer 0: hoisted direction select, then recurrence -----
    _dir_select(pre0_ref, pre_sel_ref, is_fwd8, T)
    _bidir_recurrence(pre_sel_ref, w0hh_ref[...], ys0_ref, T, H,
                      is_g, fwd_mask, bwd_mask)

    # ----- layer 1 fused input projection (one 8H GEMM, bf16 MXU, f32 acc) --
    y0 = ys0_ref[...].astype(jnp.bfloat16)          # (T, 2H)
    pre_sel_ref[...] = (jnp.dot(y0, w1ih_ref[...],
                                preferred_element_type=jnp.float32)
                        + b1_ref[...])
    _dir_select(pre_sel_ref, pre_sel_ref, is_fwd8, T)   # in-place (pairwise)

    # ----- layer 1 recurrence, written directly into the kernel output -----
    _bidir_recurrence(pre_sel_ref, w1hh_ref[...], out_ref, T, H,
                      is_g, fwd_mask, bwd_mask)


# ---------------------------------------------------------------------------
# Parameter init (PyTorch-style) and forward wrapper.
# ---------------------------------------------------------------------------
def init_params(key, feature_size=FEATURE_SIZE, hidden=HIDDEN_SIZE):
    """PyTorch LSTM init: U(-1/sqrt(H), 1/sqrt(H)). Biases b_ih+b_hh fused."""
    bound = 1.0 / jnp.sqrt(jnp.float32(hidden))
    params = []
    layer_in = [feature_size, feature_size, 2 * hidden, 2 * hidden]
    for fin in layer_in:
        key, k1, k2, k3, k4 = jax.random.split(key, 5)
        w_ih = jax.random.uniform(k1, (fin, 4 * hidden), jnp.float32, -bound, bound)
        w_hh = jax.random.uniform(k2, (hidden, 4 * hidden), jnp.float32, -bound, bound)
        b_ih = jax.random.uniform(k3, (1, 4 * hidden), jnp.float32, -bound, bound)
        b_hh = jax.random.uniform(k4, (1, 4 * hidden), jnp.float32, -bound, bound)
        params += [w_ih, w_hh, b_ih + b_hh]
    return params  # 12 arrays: [l0f, l0b, l1f, l1b] x (w_ih, w_hh, b)


def twostream_network_lstm(rgb_feat, flow_feat, params):
    """Forward pass. flow_feat accepted for API parity but (as in the PyTorch
    forward, where feat = rgbout) does not affect the output. Dropout = eval."""
    del flow_feat  # unused, matching `feat = rgbout` in the reference forward
    T, F = rgb_feat.shape
    H = HIDDEN_SIZE
    (w0f_ih, w0f_hh, b0f, w0b_ih, w0b_hh, b0b,
     w1f_ih, w1f_hh, b1f, w1b_ih, w1b_hh, b1b) = params

    # Fused weights. All matmul operands in bf16 (f32 MXU accumulation);
    # biases and pre-activations stay f32.
    w0_ih = _fuse_cols(w0f_ih, w0b_ih, H).astype(jnp.bfloat16)   # (F, 8H)
    b0 = _fuse_cols(b0f, b0b, H)                                  # (1, 8H)
    w0_hh = _fuse_hh(w0f_hh, w0b_hh, H).astype(jnp.bfloat16)      # (2H, 8H)
    w1_ih = _fuse_cols(w1f_ih, w1b_ih, H).astype(jnp.bfloat16)    # (2H, 8H)
    b1 = _fuse_cols(b1f, b1b, H)                                  # (1, 8H)
    w1_hh = _fuse_hh(w1f_hh, w1b_hh, H).astype(jnp.bfloat16)      # (2H, 8H)

    x = rgb_feat.astype(jnp.bfloat16)

    # Layer-0 projection tiling:
    #  * T <= 128 : single tile, padded to a multiple of 8 (tiny workload).
    #  * T  > 128 : >= 2 tiles (pipelining + v7x megacore sharding), tile
    #    capped at 256 rows so x/w/out double-buffered stays well inside the
    #    16 MiB (v5e) / 32 MiB (v6e, v7x) scoped-VMEM defaults at F=4096.
    if T > 128:
        tm = min(256, _round_up(pl.cdiv(T, 2), 8))
    else:
        tm = _round_up(T, 8)
    T_pad = _round_up(T, tm)
    if T_pad != T:
        x = jnp.pad(x, ((0, T_pad - T), (0, 0)))
    grid = (T_pad // tm,)

    pre0 = pl.pallas_call(
        proj_kernel,
        out_shape=jax.ShapeDtypeStruct((T_pad, 8 * H), jnp.float32),
        grid_spec=pltpu.PrefetchScalarGridSpec(
            num_scalar_prefetch=0,
            grid=grid,
            in_specs=[pl.BlockSpec((tm, F), lambda i: (i, 0)),
                      pl.BlockSpec((F, 8 * H), lambda i: (0, 0)),
                      pl.BlockSpec((1, 8 * H), lambda i: (0, 0))],
            out_specs=pl.BlockSpec((tm, 8 * H), lambda i: (i, 0))),
        compiler_params=pltpu.CompilerParams(
            dimension_semantics=("parallel",)),
        cost_estimate=pl.CostEstimate(
            flops=2 * T_pad * F * 8 * H,
            transcendentals=0,
            bytes_accessed=T_pad * F * 2 + F * 8 * H * 2 + 8 * H * 4
                           + T_pad * 8 * H * 4),
    )(x, w0_ih, b0)

    # Small serial kernel: both bidirectional recurrences + layer-1 projection.
    # (Kept as a second pallas_call; pre0 is only ~T KiB so the HBM hand-off
    #  is negligible next to the serial recurrence.)
    vmem = pl.BlockSpec(memory_space=pltpu.MemorySpace.VMEM)
    out = pl.pallas_call(
        bilstm_kernel,
        out_shape=jax.ShapeDtypeStruct((T, 2 * H), jnp.float32),
        in_specs=[vmem] * 5,
        out_specs=vmem,
        scratch_shapes=[pltpu.VMEM((T, 8 * H), jnp.float32),   # pre_sel
                        pltpu.VMEM((T, 2 * H), jnp.float32)],  # y of layer 0
        cost_estimate=pl.CostEstimate(
            flops=2 * T * (2 * H) * (8 * H) * 3,
            transcendentals=T * 2 * (8 * H + 2 * H),
            bytes_accessed=T_pad * 8 * H * 4 + 3 * (2 * H) * (8 * H) * 2
                           + 8 * H * 4 + T * 2 * H * 4),
    )(pre0, w0_hh, w1_ih, b1, w1_hh)
    return out  # (T, 2H)  == out.squeeze(1) in the PyTorch module


# ------------------------- pure-JAX reference (for checking) -----------------
def _q(a):
    """bf16 round-trip, mirroring the kernel's matmul-operand quantization."""
    return a.astype(jnp.bfloat16).astype(jnp.float32)


def _ref_direction(x, w_ih, w_hh, b, reverse):
    T = x.shape[0]
    H = HIDDEN_SIZE
    h = jnp.zeros((1, H), jnp.float32)
    c = jnp.zeros((1, H), jnp.float32)
    ys = [None] * T
    order = range(T - 1, -1, -1) if reverse else range(T)
    for t in order:
        g = x[t:t + 1] @ w_ih + _q(h) @ w_hh + b
        i_g = jax.nn.sigmoid(g[:, 0 * H:1 * H])
        f_g = jax.nn.sigmoid(g[:, 1 * H:2 * H])
        g_g = jnp.tanh(g[:, 2 * H:3 * H])
        o_g = jax.nn.sigmoid(g[:, 3 * H:4 * H])
        c = f_g * c + i_g * g_g
        h = o_g * jnp.tanh(c)
        ys[t] = h
    return jnp.concatenate(ys, axis=0)


def reference_forward(rgb_feat, params):
    """Same math as the kernel, including its bf16 quantization points
    (layer inputs, all weight matrices, h at the recurrent matmul), so the
    comparison isolates kernel correctness from quantization choices."""
    (w0f_ih, w0f_hh, b0f, w0b_ih, w0b_hh, b0b,
     w1f_ih, w1f_hh, b1f, w1b_ih, w1b_hh, b1b) = params
    x = _q(rgb_feat)
    y0 = jnp.concatenate([
        _ref_direction(x, _q(w0f_ih), _q(w0f_hh), b0f, False),
        _ref_direction(x, _q(w0b_ih), _q(w0b_hh), b0b, True)], axis=-1)
    y0q = _q(y0)
    y1 = jnp.concatenate([
        _ref_direction(y0q, _q(w1f_ih), _q(w1f_hh), b1f, False),
        _ref_direction(y0q, _q(w1b_ih), _q(w1b_hh), b1b, True)], axis=-1)
    return y1


if __name__ == "__main__":
    key = jax.random.PRNGKey(0)
    k_rgb, k_flow, k_par = jax.random.split(key, 3)

    # Synthetic feature sequences that the (identity-substituted) RGB / Flow
    # streams would produce: (T, FEATURE_SIZE), batch = 1 (squeezed).
    rgb_feat = jax.random.normal(k_rgb, (SEQ_LEN, FEATURE_SIZE), jnp.float32)
    flow_feat = jax.random.normal(k_flow, (SEQ_LEN, FEATURE_SIZE), jnp.float32)

    params = init_params(k_par)

    out = twostream_network_lstm(rgb_feat, flow_feat, params)
    out = jax.block_until_ready(out)

    ref = reference_forward(rgb_feat, params)

    assert out.shape == (SEQ_LEN, 2 * HIDDEN_SIZE)
    err = float(jnp.max(jnp.abs(out - ref)))
    # Tolerance sized for residual bf16 rounding-boundary divergence of the
    # running h between kernel and reference (typically ~1e-5 here).
    assert jnp.allclose(out, ref, atol=5e-3, rtol=5e-3), \
        f"mismatch vs reference, max abs err={err}"

    print("KERNEL_OK")
</pallas_src>

<mosaic_0001>
module attributes {stable_mosaic.version = 11 : i64} {
  func.func @proj_kernel(%arg0: i32, %arg1: memref<8x256xbf16, #tpu.memory_space<vmem>>, %arg2: memref<256x256xbf16, #tpu.memory_space<vmem>>, %arg3: memref<1x256xf32, #tpu.memory_space<vmem>>, %arg4: memref<8x256xf32, #tpu.memory_space<vmem>>) attributes {dimension_semantics = [#tpu.dimension_semantics<parallel>], iteration_bounds = array<i64: 1>, scalar_prefetch = 0 : i64, scratch_operands = 0 : i64, tpu.core_type = #tpu.core_type<tc>, window_params = [{transform_indices = @transform_0, window_bounds = array<i64: 8, 256>}, {pipeline_mode = #tpu.pipeline_mode<synchronous>, transform_indices = @transform_1, window_bounds = array<i64: 256, 256>}, {pipeline_mode = #tpu.pipeline_mode<synchronous>, transform_indices = @transform_2, window_bounds = array<i64: 1, 256>}, {transform_indices = @transform_3, window_bounds = array<i64: 8, 256>}]} {
    %c0 = arith.constant 0 : index
    %c0_0 = arith.constant 0 : index
    %0 = vector.load %arg1[%c0, %c0_0] : memref<8x256xbf16, #tpu.memory_space<vmem>>, vector<8x256xbf16>
    %c0_1 = arith.constant 0 : index
    %c0_2 = arith.constant 0 : index
    %1 = vector.load %arg2[%c0_1, %c0_2] : memref<256x256xbf16, #tpu.memory_space<vmem>>, vector<256x256xbf16>
    %cst = arith.constant dense<0.000000e+00> : vector<8x256xf32>
    %2 = tpu.matmul %0, %1, %cst {dimension_numbers = #tpu.dot_dimension_numbers<[1], [0], [0], [1], [0, 0, 1, 1], [], []>} : vector<8x256xbf16>, vector<256x256xbf16>, vector<8x256xf32> -> vector<8x256xf32>
    %c0_3 = arith.constant 0 : index
    %c0_4 = arith.constant 0 : index
    %3 = vector.load %arg3[%c0_3, %c0_4] : memref<1x256xf32, #tpu.memory_space<vmem>>, vector<1x256xf32>
    %4 = vector.broadcast %3 : vector<1x256xf32> to vector<8x256xf32>
    %5 = arith.addf %2, %4 : vector<8x256xf32>
    %c0_5 = arith.constant 0 : index
    %c0_6 = arith.constant 0 : index
    %6 = vector.load %arg4[%c0_5, %c0_6] : memref<8x256xf32, #tpu.memory_space<vmem>>, vector<8x256xf32>
    tpu.vector_store %arg4[%c0_5, %c0_6], %5 {strides = array<i32>} : memref<8x256xf32, #tpu.memory_space<vmem>>, vector<8x256xf32>,
    return
  }
  func.func @transform_0(%arg0: i32) -> (i32, i32) {
    %c0_i32 = arith.constant 0 : i32
    %c0_i32_0 = arith.constant 0 : i32
    return %arg0, %c0_i32 : i32, i32
  }
  func.func @transform_1(%arg0: i32) -> (i32, i32) {
    %c0_i32 = arith.constant 0 : i32
    %c0_i32_0 = arith.constant 0 : i32
    %c0_i32_1 = arith.constant 0 : i32
    return %c0_i32, %c0_i32_0 : i32, i32
  }
  func.func @transform_2(%arg0: i32) -> (i32, i32) {
    %c0_i32 = arith.constant 0 : i32
    %c0_i32_0 = arith.constant 0 : i32
    %c0_i32_1 = arith.constant 0 : i32
    return %c0_i32, %c0_i32_0 : i32, i32
  }
  func.func @transform_3(%arg0: i32) -> (i32, i32) {
    %c0_i32 = arith.constant 0 : i32
    %c0_i32_0 = arith.constant 0 : i32
    return %arg0, %c0_i32 : i32, i32
  }
}

</mosaic_0001>

<llo_original>
// kernel: tpu_custom_call.1
$region0: #{tpu_custom_call.1}
  #allocation0 [shape = 'u32[]', space=smem, size = 0x4, offset = 0x4, fixed_abs, tag = 'smem constant byte address 0x4 - core index']
  #allocation1 [shape = 'u32[144,128]{1,0:T(1,128)}', space=vmem, size = 0x12000, scoped, tag = 'internal scratch']
  %s0 = inlined_call_operand.hbm [shape: bf16[8,256], index: 0, kind: input, shape index: {}]
  %s1 = inlined_call_operand.hbm [shape: bf16[256,256], index: 1, kind: input, shape index: {}]
  %s2 = inlined_call_operand.vmem [shape: f32[1,256], index: 2, kind: input, shape index: {}]
  %s3 = inlined_call_operand.hbm [shape: f32[8,256], index: 3, kind: output, shape index: {}]
  %s4 = sld [smem:[#allocation0]]
  $region30: #{tpu_custom_call.1} parent=0
    _
  %s6 = ssub.s32 1, %s4
  %s7 = scalar_select 0, %s6, %s4
  $region1: #{tpu_custom_call.1} parent=0
    #allocation2 [shape = 'u8[4096]{0}', space=vmem, size = 0x1000, scoped, tag = 'input window, operand 0, single buffered']
    #allocation3 [shape = 's32[1]{0}', space=sflag, size = 0x4, scoped, tag = 'scoped memory for tpu_custom_call.1']
    #allocation4 [shape = 's32[1]{0}', space=sflag, size = 0x4, scoped, tag = 'scoped memory for tpu_custom_call.1']
    #allocation5 [shape = 'u8[131072]{0}', space=vmem, size = 0x20000, scoped, tag = 'input window, operand 1, single buffered']
    #allocation6 [shape = 's32[1]{0}', space=sflag, size = 0x4, scoped, tag = 'scoped memory for tpu_custom_call.1']
    #allocation7 [shape = 'u8[8192]{0}', space=vmem, size = 0x2000, scoped, tag = 'output window, operand 0, single buffered']
    %8 = vsyncpa [#allocation3], 0
    %9 = vsyncpa [#allocation6], 0
    %10 = vsyncpa [#allocation4], 0
    // Predicated region
    $region2: #{tpu_custom_call.1} parent=1 // pred_check
      _
    $region3: #{tpu_custom_call.1} parent=1 // pred_check_branch
      %12 = sbr.rel (0) target = $region5
    $region4: #{tpu_custom_call.1} parent=1 // pred_region
      %s14 = ssub.s32 128, 128
      %15 = vsyncadd [#allocation3], %s14
      %s17 = sshll.u32 [#allocation2], 4
      %s18 = int_to_ptr.vmem [resolvable:$true] %s17
      %20 = dma.hbm_to_vmem [thread:$0]  %s0, 128, %s18, [#allocation3]
    $region5: #{tpu_custom_call.1} parent=1 // pred_fallthru
      _
    // Predicated region
    $region6: #{tpu_custom_call.1} parent=1 // pred_check
      _
    $region7: #{tpu_custom_call.1} parent=1 // pred_check_branch
      %22 = sbr.rel (0) target = $region9
    $region8: #{tpu_custom_call.1} parent=1 // pred_region
      %s24 = ssub.s32 4096, 4096
      %25 = vsyncadd [#allocation6], %s24
      %s26 = sshll.u32 [#allocation5], 4
      %s27 = int_to_ptr.vmem [resolvable:$true] %s26
      %32 = dma.hbm_to_vmem [thread:$0]  %s1, 4096, %s27, [#allocation6], 128, 128, 8
    $region9: #{tpu_custom_call.1} parent=1 // pred_fallthru
      _
    // Predicated region
    $region10: #{tpu_custom_call.1} parent=1 // pred_check
      _
    $region11: #{tpu_custom_call.1} parent=1 // pred_check_branch
      %34 = sbr.rel (0) target = $region13
    $region12: #{tpu_custom_call.1} parent=1 // pred_region
      _
    $region13: #{tpu_custom_call.1} parent=1 // pred_fallthru
      _
    // Predicated region
    $region14: #{tpu_custom_call.1} parent=1 // pred_check
      _
    $region15: #{tpu_custom_call.1} parent=1 // pred_check_branch
      %36 = sbr.rel (0) target = $region17
    $region16: #{tpu_custom_call.1} parent=1 // pred_region
      %37 = dma.done [#allocation3], 128
    $region17: #{tpu_custom_call.1} parent=1 // pred_fallthru
      _
    // Predicated region
    $region18: #{tpu_custom_call.1} parent=1 // pred_check
      _
    $region19: #{tpu_custom_call.1} parent=1 // pred_check_branch
      %39 = sbr.rel (0) target = $region21
    $region20: #{tpu_custom_call.1} parent=1 // pred_region
      %40 = dma.done [#allocation6], 4096
    $region21: #{tpu_custom_call.1} parent=1 // pred_fallthru
      _
    %v41 = vld [vmem:[#allocation2] sm:$0xff]
    %v42 = vld [vmem:[#allocation5] sm:$0xff]
    %v43 = vld [vmem:[#allocation5 + $0x8] sm:$0xff]
    %v44 = vld [vmem:[#allocation5 + $0x10] sm:$0xff]
    %v45 = vld [vmem:[#allocation5 + $0x18] sm:$0xff]
    %v46 = vld [vmem:[#allocation5 + $0x20] sm:$0xff]
    %v47 = vld [vmem:[#allocation5 + $0x28] sm:$0xff]
    %v48 = vld [vmem:[#allocation5 + $0x30] sm:$0xff]
    %v49 = vld [vmem:[#allocation5 + $0x38] sm:$0xff]
    %v50 = vld [vmem:[#allocation5 + $0x40] sm:$0xff]
    %v51 = vld [vmem:[#allocation5 + $0x48] sm:$0xff]
    %v52 = vld [vmem:[#allocation5 + $0x50] sm:$0xff]
    %v53 = vld [vmem:[#allocation5 + $0x58] sm:$0xff]
    %v54 = vld [vmem:[#allocation5 + $0x60] sm:$0xff]
    %v55 = vld [vmem:[#allocation5 + $0x68] sm:$0xff]
    %v56 = vld [vmem:[#allocation5 + $0x70] sm:$0xff]
    %v57 = vld [vmem:[#allocation5 + $0x78] sm:$0xff]
    %v58 = vld [vmem:[#allocation5 + $0x80] sm:$0xff]
    %v59 = vld [vmem:[#allocation5 + $0x88] sm:$0xff]
    %v60 = vld [vmem:[#allocation5 + $0x90] sm:$0xff]
    %v61 = vld [vmem:[#allocation5 + $0x98] sm:$0xff]
    %v62 = vld [vmem:[#allocation5 + $0xa0] sm:$0xff]
    %v63 = vld [vmem:[#allocation5 + $0xa8] sm:$0xff]
    %v64 = vld [vmem:[#allocation5 + $0xb0] sm:$0xff]
    %v65 = vld [vmem:[#allocation5 + $0xb8] sm:$0xff]
    %v66 = vld [vmem:[#allocation5 + $0xc0] sm:$0xff]
    %v67 = vld [vmem:[#allocation5 + $0xc8] sm:$0xff]
    %v68 = vld [vmem:[#allocation5 + $0xd0] sm:$0xff]
    %v69 = vld [vmem:[#allocation5 + $0xd8] sm:$0xff]
    %v70 = vld [vmem:[#allocation5 + $0xe0] sm:$0xff]
    %v71 = vld [vmem:[#allocation5 + $0xe8] sm:$0xff]
    %v72 = vld [vmem:[#allocation5 + $0xf0] sm:$0xff]
    %v73 = vld [vmem:[#allocation5 + $0xf8] sm:$0xff]
    %v74 = vld [vmem:[%s2] sm:$0x3]
    %v76 = vlaneseq
    %v77 = vshrl.u32 %v76, 7
    %v78 = vsub.s32 0, %v77
    %v79 = vrot.slane %v74, %v78
    %v80 = vlaneseq
    %v81 = vshrl.u32 %v80, 7
    %v82 = vsub.s32 1, %v81
    %v83 = vrot.slane %v74, %v82
    %v87 = vunpack.c.l.b16 %v41
    %v88 = vunpack.c.h.b16 %v41
    %v89 = vpack.c.b16 %v87, %v87
    %v90 = vpack.c.b16 %v88, %v88
    %v125 = vunpack.c.l.b16 %v42
    %v126 = vunpack.c.h.b16 %v42
    %v127 = vunpack.c.l.b16 %v43
    %v128 = vunpack.c.h.b16 %v43
    %v129 = vunpack.c.l.b16 %v44
    %v130 = vunpack.c.h.b16 %v44
    %v131 = vunpack.c.l.b16 %v45
    %v132 = vunpack.c.h.b16 %v45
    %v133 = vunpack.c.l.b16 %v46
    %v134 = vunpack.c.h.b16 %v46
    %v135 = vunpack.c.l.b16 %v47
    %v136 = vunpack.c.h.b16 %v47
    %v137 = vunpack.c.l.b16 %v48
    %v138 = vunpack.c.h.b16 %v48
    %v139 = vunpack.c.l.b16 %v49
    %v140 = vunpack.c.h.b16 %v49
    %v141 = vunpack.c.l.b16 %v50
    %v142 = vunpack.c.h.b16 %v50
    %v143 = vunpack.c.l.b16 %v51
    %v144 = vunpack.c.h.b16 %v51
    %v145 = vunpack.c.l.b16 %v52
    %v146 = vunpack.c.h.b16 %v52
    %v147 = vunpack.c.l.b16 %v53
    %v148 = vunpack.c.h.b16 %v53
    %v149 = vunpack.c.l.b16 %v54
    %v150 = vunpack.c.h.b16 %v54
    %v151 = vunpack.c.l.b16 %v55
    %v152 = vunpack.c.h.b16 %v55
    %v153 = vunpack.c.l.b16 %v56
    %v154 = vunpack.c.h.b16 %v56
    %v155 = vunpack.c.l.b16 %v57
    %v156 = vunpack.c.h.b16 %v57
    %v157 = vunpack.c.l.b16 %v58
    %v158 = vunpack.c.h.b16 %v58
    %v159 = vunpack.c.l.b16 %v59
    %v160 = vunpack.c.h.b16 %v59
    %v161 = vunpack.c.l.b16 %v60
    %v162 = vunpack.c.h.b16 %v60
    %v163 = vunpack.c.l.b16 %v61
    %v164 = vunpack.c.h.b16 %v61
    %v165 = vunpack.c.l.b16 %v62
    %v166 = vunpack.c.h.b16 %v62
    %v167 = vunpack.c.l.b16 %v63
    %v168 = vunpack.c.h.b16 %v63
    %v169 = vunpack.c.l.b16 %v64
    %v170 = vunpack.c.h.b16 %v64
    %v171 = vunpack.c.l.b16 %v65
    %v172 = vunpack.c.h.b16 %v65
    %v173 = vunpack.c.l.b16 %v66
    %v174 = vunpack.c.h.b16 %v66
    %v175 = vunpack.c.l.b16 %v67
    %v176 = vunpack.c.h.b16 %v67
    %v177 = vunpack.c.l.b16 %v68
    %v178 = vunpack.c.h.b16 %v68
    %v179 = vunpack.c.l.b16 %v69
    %v180 = vunpack.c.h.b16 %v69
    %v181 = vunpack.c.l.b16 %v70
    %v182 = vunpack.c.h.b16 %v70
    %v183 = vunpack.c.l.b16 %v71
    %v184 = vunpack.c.h.b16 %v71
    %v185 = vunpack.c.l.b16 %v72
    %v186 = vunpack.c.h.b16 %v72
    %v187 = vunpack.c.l.b16 %v73
    %v188 = vunpack.c.h.b16 %v73
    %v189 = vpack.c.b16 %v127, %v125
    %v190 = vpack.c.b16 %v128, %v126
    %v191 = vpack.c.b16 %v131, %v129
    %v192 = vpack.c.b16 %v132, %v130
    %v193 = vpack.c.b16 %v135, %v133
    %v194 = vpack.c.b16 %v136, %v134
    %v195 = vpack.c.b16 %v139, %v137
    %v196 = vpack.c.b16 %v140, %v138
    %v197 = vpack.c.b16 %v143, %v141
    %v198 = vpack.c.b16 %v144, %v142
    %v199 = vpack.c.b16 %v147, %v145
    %v200 = vpack.c.b16 %v148, %v146
    %v201 = vpack.c.b16 %v151, %v149
    %v202 = vpack.c.b16 %v152, %v150
    %v203 = vpack.c.b16 %v155, %v153
    %v204 = vpack.c.b16 %v156, %v154
    %v205 = vpack.c.b16 %v159, %v157
    %v206 = vpack.c.b16 %v160, %v158
    %v207 = vpack.c.b16 %v163, %v161
    %v208 = vpack.c.b16 %v164, %v162
    %v209 = vpack.c.b16 %v167, %v165
    %v210 = vpack.c.b16 %v168, %v166
    %v211 = vpack.c.b16 %v171, %v169
    %v212 = vpack.c.b16 %v172, %v170
    %v213 = vpack.c.b16 %v175, %v173
    %v214 = vpack.c.b16 %v176, %v174
    %v215 = vpack.c.b16 %v179, %v177
    %v216 = vpack.c.b16 %v180, %v178
    %v217 = vpack.c.b16 %v183, %v181
    %v218 = vpack.c.b16 %v184, %v182
    %v219 = vpack.c.b16 %v187, %v185
    %v220 = vpack.c.b16 %v188, %v186
    %253 = vmatprep.subr.bf16.mxu0 %v190
    %254 = vmatpush1.bf16.msra.mxu0 %v189
    %255 = vmatprep.subr.bf16.mxu0 %v192
    %256 = vmatpush1.bf16.msra.mxu0 %v191
    %257 = vmatprep.subr.bf16.mxu0 %v194
    %258 = vmatpush1.bf16.msra.mxu0 %v193
    %259 = vmatprep.subr.bf16.mxu0 %v196
    %260 = vmatpush1.bf16.msra.mxu0 %v195
    %261 = vmatprep.subr.bf16.mxu0 %v198
    %262 = vmatpush1.bf16.msra.mxu0 %v197
    %263 = vmatprep.subr.bf16.mxu0 %v200
    %264 = vmatpush1.bf16.msra.mxu0 %v199
    %265 = vmatprep.subr.bf16.mxu0 %v202
    %266 = vmatpush1.bf16.msra.mxu0 %v201
    %267 = vmatprep.subr.bf16.mxu0 %v204
    %268 = vmatpush1.bf16.msra.mxu0 %v203
    %269 = vmatprep.subr.bf16.mxu0 %v206
    %270 = vmatpush1.bf16.msra.mxu0 %v205
    %271 = vmatprep.subr.bf16.mxu0 %v208
    %272 = vmatpush1.bf16.msra.mxu0 %v207
    %273 = vmatprep.subr.bf16.mxu0 %v210
    %274 = vmatpush1.bf16.msra.mxu0 %v209
    %275 = vmatprep.subr.bf16.mxu0 %v212
    %276 = vmatpush1.bf16.msra.mxu0 %v211
    %277 = vmatprep.subr.bf16.mxu0 %v214
    %278 = vmatpush1.bf16.msra.mxu0 %v213
    %279 = vmatprep.subr.bf16.mxu0 %v216
    %280 = vmatpush1.bf16.msra.mxu0 %v215
    %281 = vmatprep.subr.bf16.mxu0 %v218
    %282 = vmatpush1.bf16.msra.mxu0 %v217
    %283 = vmatprep.subr.bf16.mxu0 %v220
    %284 = vmatpush1.bf16.msra.mxu0 %v219
    %285 = vmatprep.mubr.bf16.mxu0 %v90
    %286 = vmatmul.mubr.bf16.gmra.mrb[0].mxu0 %v89
    %v287 = vpop.f32.mrb[0].mxu0
    %v288 = vadd.f32 %v79, %v287
    %v289 = vpop.f32.mrb[0].mxu0
    %v290 = vadd.f32 %v83, %v289
    %v291 = vpop.f32.mrb[0].mxu0
    %v292 = vpop.f32.mrb[0].mxu0
    %293 = vdwg.mxu0
    %294 = vst [vmem:[#allocation7] sm:$0xff] %v288
    %295 = vst [vmem:[#allocation7 + $0x8] sm:$0xff] %v290
    // Predicated region
    $region22: #{tpu_custom_call.1} parent=1 // pred_check
      _
    $region23: #{tpu_custom_call.1} parent=1 // pred_check_branch
      %297 = sbr.rel (0) target = $region25
    $region24: #{tpu_custom_call.1} parent=1 // pred_region
      %s299 = ssub.s32 256, 256
      %300 = vsyncadd [#allocation4], %s299
      %s302 = sshll.u32 [#allocation7], 4
      %s303 = int_to_ptr.vmem [resolvable:$true] %s302
      %305 = dma.vmem_to_hbm [thread:$0]  %s303, 256, %s3, [#allocation4]
    $region25: #{tpu_custom_call.1} parent=1 // pred_fallthru
      _
    // Predicated region
    $region26: #{tpu_custom_call.1} parent=1 // pred_check
      _
    $region27: #{tpu_custom_call.1} parent=1 // pred_check_branch
      %307 = sbr.rel (0) target = $region29
    $region28: #{tpu_custom_call.1} parent=1 // pred_region
      %308 = dma.done [#allocation4], 256
    $region29: #{tpu_custom_call.1} parent=1 // pred_fallthru
      _
    %309 = vsyncpa [#allocation3], 1
    %310 = vsyncpa [#allocation6], 1
    %311 = vsyncpa [#allocation4], 1

</llo_original>
